<compile_context>
chip_gen: v6e
topology: v6e:2x2x1
jax: 0.10.0
libtpu: 0.0.40
codegen_flags: <defaults>
</compile_context>

<pallas_src>
import functools

import jax
import jax.numpy as jnp
from jax.experimental import pallas as pl
from jax.experimental.pallas import tpu as pltpu


# ----------------------------------------------------------------------------
# Pallas kernel
# ----------------------------------------------------------------------------
def convblock_kernel(x_ref, w_ref, scale_ref, shift_ref, o_ref, patch_ref, *,
                     K, Cin, stride, L_conv):
    """Fused Conv1d + folded BN + ReLU + MaxPool1d(2, stride=1) for one batch row.

    x_ref:     (Lp, Cin)         zero-padded input, NLC layout (channels on lanes)
    w_ref:     (K*Cin, Cout_p)   im2col weight, Cout padded to 128-lane multiple
    scale_ref: (1, Cout_p)       folded BN scale
    shift_ref: (1, Cout_p)       folded BN shift (includes conv bias)
    o_ref:     (L_conv-1, Cout_p)
    patch_ref: (L_conv, K*Cin)   VMEM scratch holding the im2col patch matrix
    """
    # Build the im2col patch from K (strided) windows of the padded input.
    for k in range(K):                                   # static unroll over taps
        if stride == 1:
            win = x_ref[pl.ds(k, L_conv), :]             # contiguous window
        else:
            win = x_ref[pl.ds(k, L_conv, stride=stride), :]
        patch_ref[:, k * Cin:(k + 1) * Cin] = win

    # Single MXU matmul: contraction over K*Cin (instead of K tiny dots over Cin).
    y = jnp.dot(patch_ref[...], w_ref[...], preferred_element_type=jnp.float32)
    y = y * scale_ref[...] + shift_ref[...]              # folded BatchNorm1d (+bias)
    y = jnp.maximum(y, 0.0)                              # ReLU
    o_ref[...] = jnp.maximum(y[:-1, :], y[1:, :])        # MaxPool1d(kernel=2, stride=1)


# ----------------------------------------------------------------------------
# Wrapper
# ----------------------------------------------------------------------------
def conv_block(x_ncl, w, bias, gamma, beta, running_mean, running_var, *,
               stride=1, eps=1e-5):
    """ConvBlock forward. x_ncl: (B, Cin, L) -> (B, Cout, L_out), PyTorch NCL."""
    B, Cin, L = x_ncl.shape
    Cout, _, K = w.shape
    pad = K // 2
    Lp = L + 2 * pad
    L_conv = (Lp - K) // stride + 1
    L_out = L_conv - 1                                   # MaxPool1d(2, stride=1)
    assert L_conv >= 2, "input too short for MaxPool1d(kernel=2, stride=1)"

    # Fold BatchNorm1d (inference) + conv bias into per-channel scale/shift.
    scale = gamma / jnp.sqrt(running_var + eps)
    shift = scale * (bias - running_mean) + beta

    # Lane-dense output channels: pad Cout up to a multiple of 128.
    Cout_p = ((Cout + 127) // 128) * 128
    w_mat = jnp.transpose(w, (2, 1, 0)).reshape(K * Cin, Cout)   # (K*Cin, Cout)
    w_mat = jnp.pad(w_mat.astype(jnp.float32), ((0, 0), (0, Cout_p - Cout)))
    scale_p = jnp.pad(scale.reshape(1, Cout).astype(jnp.float32),
                      ((0, 0), (0, Cout_p - Cout)))
    shift_p = jnp.pad(shift.reshape(1, Cout).astype(jnp.float32),
                      ((0, 0), (0, Cout_p - Cout)))

    # NCL -> NLC (channels on the 128-lane axis) and zero-pad length ('same' conv).
    x_nlc = jnp.transpose(x_ncl, (0, 2, 1)).astype(jnp.float32)
    xp = jnp.pad(x_nlc, ((0, 0), (pad, pad), (0, 0)))

    out_p = pl.pallas_call(
        functools.partial(convblock_kernel, K=K, Cin=Cin, stride=stride,
                          L_conv=L_conv),
        out_shape=jax.ShapeDtypeStruct((B, L_out, Cout_p), jnp.float32),
        grid=(B,),
        in_specs=[
            pl.BlockSpec((None, Lp, Cin), lambda b: (b, 0, 0)),       # per-batch input
            pl.BlockSpec((K * Cin, Cout_p), lambda b: (0, 0)),        # shared weights
            pl.BlockSpec((1, Cout_p), lambda b: (0, 0)),
            pl.BlockSpec((1, Cout_p), lambda b: (0, 0)),
        ],
        out_specs=pl.BlockSpec((None, L_out, Cout_p), lambda b: (b, 0, 0)),
        scratch_shapes=[pltpu.VMEM((L_conv, K * Cin), jnp.float32)],
        compiler_params=pltpu.CompilerParams(
            dimension_semantics=("parallel",)),   # megacore: split batch on v7x
    )(xp, w_mat, scale_p, shift_p)

    # Drop lane padding, back to PyTorch NCL layout.
    return jnp.transpose(out_p[:, :, :Cout], (0, 2, 1))


# ----------------------------------------------------------------------------
# Pure-JAX reference (same math as eval-mode PyTorch ConvBlock)
# ----------------------------------------------------------------------------
def convblock_reference(x_ncl, w, bias, gamma, beta, running_mean, running_var,
                        *, stride=1, eps=1e-5):
    B, Cin, L = x_ncl.shape
    Cout, _, K = w.shape
    pad = K // 2
    xp = jnp.pad(x_ncl.astype(jnp.float32), ((0, 0), (0, 0), (pad, pad)))
    L_conv = (L + 2 * pad - K) // stride + 1
    idx = jnp.arange(L_conv) * stride
    acc = jnp.zeros((B, L_conv, Cout), jnp.float32)
    for k in range(K):
        acc = acc + jnp.einsum("bcl,oc->blo", xp[:, :, idx + k], w[:, :, k],
                               precision=jax.lax.Precision.HIGHEST)
    scale = gamma / jnp.sqrt(running_var + eps)
    shift = scale * (bias - running_mean) + beta
    y = jnp.maximum(acc * scale + shift, 0.0)
    y = jnp.maximum(y[:, :-1, :], y[:, 1:, :])           # MaxPool1d(2, stride=1)
    return jnp.transpose(y, (0, 2, 1))                   # (B, Cout, L_conv-1)


# ----------------------------------------------------------------------------
# Deterministic synthetic parameters
# ----------------------------------------------------------------------------
def init_convblock_params(key, Cin, Cout, K):
    kw, kb, kg, kbe, km, kv = jax.random.split(key, 6)
    w = jax.random.normal(kw, (Cout, Cin, K), jnp.float32) / jnp.sqrt(K * Cin)
    bias = 0.05 * jax.random.normal(kb, (Cout,), jnp.float32)
    gamma = 1.0 + 0.1 * jax.random.normal(kg, (Cout,), jnp.float32)
    beta = 0.05 * jax.random.normal(kbe, (Cout,), jnp.float32)
    mean = 0.05 * jax.random.normal(km, (Cout,), jnp.float32)
    var = 0.5 + jax.random.uniform(kv, (Cout,), jnp.float32)
    return w, bias, gamma, beta, mean, var


if __name__ == "__main__":
    key = jax.random.PRNGKey(0)
    configs = [
        # (B, Cin, Cout, K, stride, L)
        (2, 1, 64, 3, 1, 32),     # module defaults (in_channel=1, k=3, s=1)
        (2, 8, 48, 5, 2, 64),     # wider-kernel, strided variant
    ]
    for i, (B, Cin, Cout, K, stride, L) in enumerate(configs):
        kp, kx, key = jax.random.split(key, 3)
        params = init_convblock_params(kp, Cin, Cout, K)
        x = jax.random.normal(kx, (B, Cin, L), jnp.float32)

        out = conv_block(x, *params, stride=stride)
        out = jax.block_until_ready(out)

        L_out = (L + 2 * (K // 2) - K) // stride + 1 - 1
        assert out.shape == (B, Cout, L_out), (out.shape, (B, Cout, L_out))
        assert bool(jnp.all(jnp.isfinite(out)))

        ref = convblock_reference(x, *params, stride=stride)
        err = float(jnp.max(jnp.abs(out - ref)))
        assert err < 5e-2, f"config {i}: max abs err {err}"

    print("KERNEL_OK")
</pallas_src>

<mosaic_0001>
module attributes {stable_mosaic.version = 11 : i64} {
  func.func @convblock_kernel(%arg0: i32, %arg1: memref<1x34x1xf32, #tpu.memory_space<vmem>>, %arg2: memref<3x128xf32, #tpu.memory_space<vmem>>, %arg3: memref<1x128xf32, #tpu.memory_space<vmem>>, %arg4: memref<1x128xf32, #tpu.memory_space<vmem>>, %arg5: memref<1x31x128xf32, #tpu.memory_space<vmem>>, %arg6: memref<32x3xf32, #tpu.memory_space<vmem>>) attributes {dimension_semantics = [#tpu.dimension_semantics<parallel>], iteration_bounds = array<i64: 2>, scalar_prefetch = 0 : i64, scratch_operands = 1 : i64, tpu.core_type = #tpu.core_type<tc>, window_params = [{transform_indices = @transform_0, window_bounds = array<i64: 1, 34, 1>}, {pipeline_mode = #tpu.pipeline_mode<synchronous>, transform_indices = @transform_1, window_bounds = array<i64: 3, 128>}, {pipeline_mode = #tpu.pipeline_mode<synchronous>, transform_indices = @transform_2, window_bounds = array<i64: 1, 128>}, {pipeline_mode = #tpu.pipeline_mode<synchronous>, transform_indices = @transform_3, window_bounds = array<i64: 1, 128>}, {transform_indices = @transform_4, window_bounds = array<i64: 1, 31, 128>}]} {
    %c0 = arith.constant 0 : index
    %c0_0 = arith.constant 0 : index
    %c0_1 = arith.constant 0 : index
    %0 = vector.load %arg1[%c0, %c0_0, %c0_1] : memref<1x34x1xf32, #tpu.memory_space<vmem>>, vector<1x32x1xf32>
    %1 = vector.shape_cast %0 : vector<1x32x1xf32> to vector<32x1xf32>
    %c0_2 = arith.constant 0 : index
    %c0_3 = arith.constant 0 : index
    %2 = vector.load %arg6[%c0_2, %c0_3] : memref<32x3xf32, #tpu.memory_space<vmem>>, vector<32x1xf32>
    tpu.vector_store %arg6[%c0_2, %c0_3], %1 {strides = array<i32>} : memref<32x3xf32, #tpu.memory_space<vmem>>, vector<32x1xf32>,
    %c0_4 = arith.constant 0 : index
    %c1 = arith.constant 1 : index
    %c0_5 = arith.constant 0 : index
    %3 = vector.load %arg1[%c0_4, %c1, %c0_5] : memref<1x34x1xf32, #tpu.memory_space<vmem>>, vector<1x32x1xf32>
    %4 = vector.shape_cast %3 : vector<1x32x1xf32> to vector<32x1xf32>
    %c0_6 = arith.constant 0 : index
    %c1_7 = arith.constant 1 : index
    %5 = vector.load %arg6[%c0_6, %c1_7] : memref<32x3xf32, #tpu.memory_space<vmem>>, vector<32x1xf32>
    tpu.vector_store %arg6[%c0_6, %c1_7], %4 {strides = array<i32>} : memref<32x3xf32, #tpu.memory_space<vmem>>, vector<32x1xf32>,
    %c0_8 = arith.constant 0 : index
    %c2 = arith.constant 2 : index
    %c0_9 = arith.constant 0 : index
    %6 = vector.load %arg1[%c0_8, %c2, %c0_9] : memref<1x34x1xf32, #tpu.memory_space<vmem>>, vector<1x32x1xf32>
    %7 = vector.shape_cast %6 : vector<1x32x1xf32> to vector<32x1xf32>
    %c0_10 = arith.constant 0 : index
    %c2_11 = arith.constant 2 : index
    %8 = vector.load %arg6[%c0_10, %c2_11] : memref<32x3xf32, #tpu.memory_space<vmem>>, vector<32x1xf32>
    tpu.vector_store %arg6[%c0_10, %c2_11], %7 {strides = array<i32>} : memref<32x3xf32, #tpu.memory_space<vmem>>, vector<32x1xf32>,
    %c0_12 = arith.constant 0 : index
    %c0_13 = arith.constant 0 : index
    %9 = vector.load %arg6[%c0_12, %c0_13] : memref<32x3xf32, #tpu.memory_space<vmem>>, vector<32x3xf32>
    %c0_14 = arith.constant 0 : index
    %c0_15 = arith.constant 0 : index
    %10 = vector.load %arg2[%c0_14, %c0_15] : memref<3x128xf32, #tpu.memory_space<vmem>>, vector<3x128xf32>
    %cst = arith.constant dense<0.000000e+00> : vector<32x128xf32>
    %11 = tpu.matmul %9, %10, %cst {dimension_numbers = #tpu.dot_dimension_numbers<[1], [0], [0], [1], [0, 0, 1, 1], [], []>} : vector<32x3xf32>, vector<3x128xf32>, vector<32x128xf32> -> vector<32x128xf32>
    %c0_16 = arith.constant 0 : index
    %c0_17 = arith.constant 0 : index
    %12 = vector.load %arg3[%c0_16, %c0_17] : memref<1x128xf32, #tpu.memory_space<vmem>>, vector<1x128xf32>
    %13 = vector.broadcast %12 : vector<1x128xf32> to vector<32x128xf32>
    %14 = arith.mulf %11, %13 : vector<32x128xf32>
    %c0_18 = arith.constant 0 : index
    %c0_19 = arith.constant 0 : index
    %15 = vector.load %arg4[%c0_18, %c0_19] : memref<1x128xf32, #tpu.memory_space<vmem>>, vector<1x128xf32>
    %16 = vector.broadcast %15 : vector<1x128xf32> to vector<32x128xf32>
    %17 = arith.addf %14, %16 : vector<32x128xf32>
    %cst_20 = arith.constant 0.000000e+00 : f32
    %18 = vector.broadcast %cst_20 : f32 to vector<32x128xf32>
    %19 = arith.maximumf %17, %18 : vector<32x128xf32>
    %20 = vector.extract_strided_slice %19 {offsets = [0, 0], sizes = [31, 128], strides = [1, 1]} : vector<32x128xf32> to vector<31x128xf32>
    %21 = vector.extract_strided_slice %19 {offsets = [1, 0], sizes = [31, 128], strides = [1, 1]} : vector<32x128xf32> to vector<31x128xf32>
    %22 = arith.maximumf %20, %21 : vector<31x128xf32>
    %c0_21 = arith.constant 0 : index
    %c0_22 = arith.constant 0 : index
    %c0_23 = arith.constant 0 : index
    %23 = vector.load %arg5[%c0_21, %c0_22, %c0_23] : memref<1x31x128xf32, #tpu.memory_space<vmem>>, vector<1x31x128xf32>
    %24 = vector.shape_cast %23 : vector<1x31x128xf32> to vector<31x128xf32>
    %25 = vector.shape_cast %22 : vector<31x128xf32> to vector<1x31x128xf32>
    tpu.vector_store %arg5[%c0_21, %c0_22, %c0_23], %25 {strides = array<i32>} : memref<1x31x128xf32, #tpu.memory_space<vmem>>, vector<1x31x128xf32>,
    return
  }
  func.func @transform_0(%arg0: i32) -> (i32, i32, i32) {
    %c0_i32 = arith.constant 0 : i32
    %c0_i32_0 = arith.constant 0 : i32
    %c0_i32_1 = arith.constant 0 : i32
    return %arg0, %c0_i32, %c0_i32_0 : i32, i32, i32
  }
  func.func @transform_1(%arg0: i32) -> (i32, i32) {
    %c0_i32 = arith.constant 0 : i32
    %c0_i32_0 = arith.constant 0 : i32
    %c0_i32_1 = arith.constant 0 : i32
    return %c0_i32, %c0_i32_0 : i32, i32
  }
  func.func @transform_2(%arg0: i32) -> (i32, i32) {
    %c0_i32 = arith.constant 0 : i32
    %c0_i32_0 = arith.constant 0 : i32
    %c0_i32_1 = arith.constant 0 : i32
    return %c0_i32, %c0_i32_0 : i32, i32
  }
  func.func @transform_3(%arg0: i32) -> (i32, i32) {
    %c0_i32 = arith.constant 0 : i32
    %c0_i32_0 = arith.constant 0 : i32
    %c0_i32_1 = arith.constant 0 : i32
    return %c0_i32, %c0_i32_0 : i32, i32
  }
  func.func @transform_4(%arg0: i32) -> (i32, i32, i32) {
    %c0_i32 = arith.constant 0 : i32
    %c0_i32_0 = arith.constant 0 : i32
    %c0_i32_1 = arith.constant 0 : i32
    return %arg0, %c0_i32, %c0_i32_0 : i32, i32, i32
  }
}

</mosaic_0001>

<llo_original>
// kernel: tpu_custom_call.1
$region0: #{tpu_custom_call.1}
  #allocation0 [shape = 'u32[]', space=smem, size = 0x4, offset = 0x4, fixed_abs, tag = 'smem constant byte address 0x4 - core index']
  #allocation1 [shape = 'u32[144,128]{1,0:T(1,128)}', space=vmem, size = 0x12000, scoped, tag = 'internal scratch']
  #allocation2 [shape = 'f32[32,3]{1,0:T(8,128)}', space=vmem, size = 0x4000, scoped, tag = 'scratch operand']
  %s0 = inlined_call_operand.vmem [shape: f32[2,34,1], index: 0, kind: input, shape index: {}]
  %s1 = inlined_call_operand.vmem [shape: f32[3,128], index: 1, kind: input, shape index: {}]
  %s2 = inlined_call_operand.vmem [shape: f32[1,128], index: 2, kind: input, shape index: {}]
  %s3 = inlined_call_operand.vmem [shape: f32[1,128], index: 3, kind: input, shape index: {}]
  %s4 = inlined_call_operand.vmem [shape: f32[2,31,128], index: 4, kind: output, shape index: {}]
  %s5 = sld [smem:[#allocation0]]
  $region49: #{tpu_custom_call.1} parent=0
    _
  %s7 = ssub.s32 1, %s5
  %s8 = scalar_select 0, %s7, %s5
  loop: start=0, step=1, limit=4
  $region2: #{tpu_custom_call.1} parent=0 // loop_pre_header
    _
  $region3: #{tpu_custom_call.1} parent=0 // loop_header
    %s10 = sphi 0, %s14
    %p11 = scmp.ge.s32.totalorder %s10, 4
    %s20 = sphi 0, %s22
    %s23 = sphi 0, %s20
    %s24 = sphi 0, %s23
    %s40 = sphi 0, %s24
    %s44 = sphi 0, %s44
    %s46 = sphi 0, %s44
    %s47 = sphi 0, %s46
    %s61 = sphi 0, %s47
    %s65 = sphi 0, %s65
    %s67 = sphi 0, %s65
    %s68 = sphi 0, %s67
    %s82 = sphi 0, %s68
    %s86 = sphi 0, %s86
    %s88 = sphi 0, %s86
    %s89 = sphi 0, %s88
    %s103 = sphi 0, %s89
    %s109 = sphi 0, %s111
    %s112 = sphi 0, %s109
    %s113 = sphi 0, %s112
    %s129 = sphi 0, %s113
  $region4: #{tpu_custom_call.1} parent=0 // loop_header_branch
    %13 = sbr.rel (%p11) target = $region8
  $region5: #{tpu_custom_call.1} parent=0 // loop_body
    %s15 = ssub.s32 %s10, 1
    %s16 = ssub.s32 %s10, 2
    %s17 = sadd.s32 %s10, 1
    %s18 = ssub.s32 %s10, %s17
    %p19 = scmp.eq.s32.totalorder %s18, 0
    %s21 = sadd.s32 %s20, 1
    %s22 = scalar_select %p19, %s20, %s21
    %p25 = pneg %p19
    %p26 = scmp.eq.s32.totalorder %s10, 1
    %p27 = por %p25, %p26
    %p28 = scmp.ne.s32.totalorder %s20, %s23
    %p29 = scmp.eq.s32.totalorder %s10, 0
    %p30 = por %p28, %p29
    %p31 = scmp.ne.s32.totalorder %s20, %s23
    %p32 = scmp.eq.s32.totalorder %s15, 1
    %p33 = por %p31, %p32
    %p34 = scmp.ne.s32.totalorder %s23, %s24
    %p35 = scmp.eq.s32.totalorder %s15, 0
    %p36 = por %p34, %p35
    %p37 = scmp.ne.s32.totalorder %s23, %s24
    %p38 = scmp.eq.s32.totalorder %s16, 1
    %p39 = por %p37, %p38
    %p41 = scmp.ne.s32.totalorder %s24, %s40
    %p42 = scmp.eq.s32.totalorder %s16, 0
    %p43 = por %p41, %p42
    %s45 = sadd.s32 %s44, 1
    %p48 = scmp.eq.s32.totalorder %s10, 1
    %p49 = scmp.ne.s32.totalorder %s44, %s46
    %p50 = scmp.eq.s32.totalorder %s10, 0
    %p51 = por %p49, %p50
    %p52 = scmp.ne.s32.totalorder %s44, %s46
    %p53 = scmp.eq.s32.totalorder %s15, 1
    %p54 = por %p52, %p53
    %p55 = scmp.ne.s32.totalorder %s46, %s47
    %p56 = scmp.eq.s32.totalorder %s15, 0
    %p57 = por %p55, %p56
    %p58 = scmp.ne.s32.totalorder %s46, %s47
    %p59 = scmp.eq.s32.totalorder %s16, 1
    %p60 = por %p58, %p59
    %p62 = scmp.ne.s32.totalorder %s47, %s61
    %p63 = scmp.eq.s32.totalorder %s16, 0
    %p64 = por %p62, %p63
    %s66 = sadd.s32 %s65, 1
    %p69 = scmp.eq.s32.totalorder %s10, 1
    %p70 = scmp.ne.s32.totalorder %s65, %s67
    %p71 = scmp.eq.s32.totalorder %s10, 0
    %p72 = por %p70, %p71
    %p73 = scmp.ne.s32.totalorder %s65, %s67
    %p74 = scmp.eq.s32.totalorder %s15, 1
    %p75 = por %p73, %p74
    %p76 = scmp.ne.s32.totalorder %s67, %s68
    %p77 = scmp.eq.s32.totalorder %s15, 0
    %p78 = por %p76, %p77
    %p79 = scmp.ne.s32.totalorder %s67, %s68
    %p80 = scmp.eq.s32.totalorder %s16, 1
    %p81 = por %p79, %p80
    %p83 = scmp.ne.s32.totalorder %s68, %s82
    %p84 = scmp.eq.s32.totalorder %s16, 0
    %p85 = por %p83, %p84
    %s87 = sadd.s32 %s86, 1
    %p90 = scmp.eq.s32.totalorder %s10, 1
    %p91 = scmp.ne.s32.totalorder %s86, %s88
    %p92 = scmp.eq.s32.totalorder %s10, 0
    %p93 = por %p91, %p92
    %p94 = scmp.ne.s32.totalorder %s86, %s88
    %p95 = scmp.eq.s32.totalorder %s15, 1
    %p96 = por %p94, %p95
    %p97 = scmp.ne.s32.totalorder %s88, %s89
    %p98 = scmp.eq.s32.totalorder %s15, 0
    %p99 = por %p97, %p98
    %p100 = scmp.ne.s32.totalorder %s88, %s89
    %p101 = scmp.eq.s32.totalorder %s16, 1
    %p102 = por %p100, %p101
    %p104 = scmp.ne.s32.totalorder %s89, %s103
    %p105 = scmp.eq.s32.totalorder %s16, 0
    %p106 = por %p104, %p105
    %s107 = ssub.s32 %s10, %s17
    %p108 = scmp.eq.s32.totalorder %s107, 0
    %s110 = sadd.s32 %s109, 1
    %s111 = scalar_select %p108, %s109, %s110
    %p114 = pneg %p108
    %p115 = scmp.eq.s32.totalorder %s10, 1
    %p116 = por %p114, %p115
    %p117 = scmp.ne.s32.totalorder %s109, %s112
    %p118 = scmp.eq.s32.totalorder %s10, 0
    %p119 = por %p117, %p118
    %p120 = scmp.ne.s32.totalorder %s109, %s112
    %p121 = scmp.eq.s32.totalorder %s15, 1
    %p122 = por %p120, %p121
    %p123 = scmp.ne.s32.totalorder %s112, %s113
    %p124 = scmp.eq.s32.totalorder %s15, 0
    %p125 = por %p123, %p124
    %p126 = scmp.ne.s32.totalorder %s112, %s113
    %p127 = scmp.eq.s32.totalorder %s16, 1
    %p128 = por %p126, %p127
    %p130 = scmp.ne.s32.totalorder %s113, %s129
    %p131 = scmp.eq.s32.totalorder %s16, 0
    %p132 = por %p130, %p131
    %p133 = scmp.le.s32.totalorder 1, %s10
    %p134 = scmp.lt.s32.totalorder %s10, 3
    %p135 = pnand %p133, %p134
    %p136 = pneg %p135
    // Predicated region
    $region9: #{tpu_custom_call.1} parent=5 // pred_check
      _
    $region10: #{tpu_custom_call.1} parent=5 // pred_check_branch
      %138 = sbr.rel (%p135) target = $region12
    $region11: #{tpu_custom_call.1} parent=5 // pred_region
      %s139 = ssub.s32 %s10, 1
      // Predicated region
      $region13: #{tpu_custom_call.1} parent=11 // pred_check
        %p140 = pneg %p57
      $region14: #{tpu_custom_call.1} parent=11 // pred_check_branch
        %142 = sbr.rel (%p140) target = $region16
      $region15: #{tpu_custom_call.1} parent=11 // pred_region
        _
      $region16: #{tpu_custom_call.1} parent=11 // pred_fallthru
        _
      // Predicated region
      $region17: #{tpu_custom_call.1} parent=11 // pred_check
        %p143 = pneg %p78
      $region18: #{tpu_custom_call.1} parent=11 // pred_check_branch
        %145 = sbr.rel (%p143) target = $region20
      $region19: #{tpu_custom_call.1} parent=11 // pred_region
        _
      $region20: #{tpu_custom_call.1} parent=11 // pred_fallthru
        _
      // Predicated region
      $region21: #{tpu_custom_call.1} parent=11 // pred_check
        %p146 = pneg %p99
      $region22: #{tpu_custom_call.1} parent=11 // pred_check_branch
        %148 = sbr.rel (%p146) target = $region24
      $region23: #{tpu_custom_call.1} parent=11 // pred_region
        _
      $region24: #{tpu_custom_call.1} parent=11 // pred_fallthru
        _
    $region12: #{tpu_custom_call.1} parent=5 // pred_fallthru
      _
    %p149 = scmp.lt.s32.totalorder %s10, 2
    // Predicated region
    $region25: #{tpu_custom_call.1} parent=5 // pred_check
      %p150 = pneg %p149
    $region26: #{tpu_custom_call.1} parent=5 // pred_check_branch
      %152 = sbr.rel (%p150) target = $region28
    $region27: #{tpu_custom_call.1} parent=5 // pred_region
      // Predicated region
      $region29: #{tpu_custom_call.1} parent=27 // pred_check
        %p153 = pneg %p30
      $region30: #{tpu_custom_call.1} parent=27 // pred_check_branch
        %155 = sbr.rel (%p153) target = $region32
      $region31: #{tpu_custom_call.1} parent=27 // pred_region
        %p156 = scmp.lt.s32.totalorder %s10, 1
        %s157 = scalar_select %p156, %s10, 1
        %s158 = smul.addr %s157, 5
        %s159 = smul.addr %s158, 8
        %s160 = scalar_lea.vmem %s0, %s159
      $region32: #{tpu_custom_call.1} parent=27 // pred_fallthru
        _
    $region28: #{tpu_custom_call.1} parent=5 // pred_fallthru
      _
    %p161 = scmp.le.s32.totalorder 1, %s10
    %p162 = scmp.lt.s32.totalorder %s10, 3
    %p163 = pnand %p161, %p162
    %p164 = pneg %p163
    // Predicated region
    $region33: #{tpu_custom_call.1} parent=5 // pred_check
      _
    $region34: #{tpu_custom_call.1} parent=5 // pred_check_branch
      %166 = sbr.rel (%p163) target = $region36
    $region35: #{tpu_custom_call.1} parent=5 // pred_region
      %s167 = ssub.s32 %s10, 1
      %p168 = scmp.lt.s32.totalorder %s15, 1
      %s169 = scalar_select %p168, %s15, 1
      %s170 = smul.addr %s169, 5
      %s171 = smul.addr %s170, 8
      %s172 = scalar_lea.vmem %s0, %s171
      %p173 = pneg %p36
      %p174 = pneg %p33
      %p175 = pneg %p57
      %p176 = pneg %p54
      %p177 = pneg %p78
      %p178 = pneg %p75
      %p179 = pneg %p99
      %p180 = pneg %p96
      %p181 = pneg %p125
      %p182 = pneg %p122
      %p183 = scmp.lt.s32.totalorder %s15, 1
      %s184 = scalar_select %p183, %s15, 1
      %s185 = smul.addr %s184, 4
      %s186 = smul.addr %s185, 8
      %s187 = scalar_lea.vmem %s4, %s186
      %p188 = scmp.lt.s32.totalorder %s15, 1
      %s189 = scalar_select %p188, %s15, 1
      %s190 = smul.addr %s189, 5
      %s191 = smul.addr %s190, 8
      %s192 = scalar_lea.vmem %s0, %s191
      %p193 = scmp.lt.s32.totalorder %s15, 1
      %s194 = scalar_select %p193, %s15, 1
      %s195 = smul.addr %s194, 4
      %s196 = smul.addr %s195, 8
      %s197 = scalar_lea.vmem %s4, %s196
      %v198 = vld [vmem:[%s192] sm:$0xff]
      %v199 = vld [vmem:[%s192 + $0x8] sm:$0xff]
      %v200 = vld [vmem:[%s192 + $0x10] sm:$0xff]
      %v201 = vld [vmem:[%s192 + $0x18] sm:$0xff]
      %vm202 = vcmask 7168
      %203 = vst.msk [vmem:[#allocation2] sm:$0xff] %vm202, %v198
      %204 = vst.msk [vmem:[#allocation2 + $0x8] sm:$0xff] %vm202, %v199
      %205 = vst.msk [vmem:[#allocation2 + $0x10] sm:$0xff] %vm202, %v200
      %206 = vst.msk [vmem:[#allocation2 + $0x18] sm:$0xff] %vm202, %v201
      %v207 = vld [vmem:[%s192 + $0x1] sm:$0xff]
      %v208 = vld [vmem:[%s192 + $0x9] sm:$0xff]
      %v209 = vld [vmem:[%s192 + $0x11] sm:$0xff]
      %v210 = vld [vmem:[%s192 + $0x19] sm:$0xff]
      %215 = vrot.lane.b32.xlu0 %v207, 1
      %v216 = vpop.permute.xlu0 %215
      %217 = vrot.lane.b32.xlu0 %v208, 1
      %v218 = vpop.permute.xlu0 %217
      %219 = vrot.lane.b32.xlu0 %v209, 1
      %v220 = vpop.permute.xlu0 %219
      %221 = vrot.lane.b32.xlu0 %v210, 1
      %v222 = vpop.permute.xlu0 %221
      %vm227 = vcmask 15368
      %228 = vst.msk [vmem:[#allocation2] sm:$0xff] %vm227, %v216
      %229 = vst.msk [vmem:[#allocation2 + $0x8] sm:$0xff] %vm227, %v218
      %230 = vst.msk [vmem:[#allocation2 + $0x10] sm:$0xff] %vm227, %v220
      %231 = vst.msk [vmem:[#allocation2 + $0x18] sm:$0xff] %vm227, %v222
      %v232 = vld [vmem:[%s192 + $0x2] sm:$0xff]
      %v233 = vld [vmem:[%s192 + $0xa] sm:$0xff]
      %v234 = vld [vmem:[%s192 + $0x12] sm:$0xff]
      %v235 = vld [vmem:[%s192 + $0x1a] sm:$0xff]
      %240 = vrot.lane.b32.xlu0 %v232, 2
      %v241 = vpop.permute.xlu0 %240
      %242 = vrot.lane.b32.xlu0 %v233, 2
      %v243 = vpop.permute.xlu0 %242
      %244 = vrot.lane.b32.xlu0 %v234, 2
      %v245 = vpop.permute.xlu0 %244
      %246 = vrot.lane.b32.xlu0 %v235, 2
      %v247 = vpop.permute.xlu0 %246
      %vm252 = vcmask 23568
      %253 = vst.msk [vmem:[#allocation2] sm:$0xff] %vm252, %v241
      %254 = vst.msk [vmem:[#allocation2 + $0x8] sm:$0xff] %vm252, %v243
      %255 = vst.msk [vmem:[#allocation2 + $0x10] sm:$0xff] %vm252, %v245
      %256 = vst.msk [vmem:[#allocation2 + $0x18] sm:$0xff] %vm252, %v247
      %v257 = vld [vmem:[#allocation2] sm:$0xff]
      %v258 = vld [vmem:[#allocation2 + $0x8] sm:$0xff]
      %v259 = vld [vmem:[#allocation2 + $0x10] sm:$0xff]
      %v260 = vld [vmem:[#allocation2 + $0x18] sm:$0xff]
      %v261 = vld [vmem:[%s1] sm:$0x7]
      %vm262 = vcmask 23552
      %v264 = vsel %vm262, %v257, 0
      %v267 = vsel %vm262, %v258, 0
      %v270 = vsel %vm262, %v259, 0
      %v273 = vsel %vm262, %v260, 0
      %vm275 = vcmask 1042432
      %v277 = vsel %vm275, %v261, 0
      %279 = vmatprep.subr.mxu0 0.0
      %280 = vmatpush1.msra.mxu0 0.0
      %281 = vmatprep.subr.mxu0 0.0
      %282 = vmatpush1.msra.mxu0 0.0
      %283 = vmatprep.subr.mxu0 0.0
      %284 = vmatpush1.msra.mxu0 0.0
      %285 = vmatprep.subr.mxu0 0.0
      %286 = vmatpush1.msra.mxu0 0.0
      %287 = vmatprep.subr.mxu0 0.0
      %288 = vmatpush1.msra.mxu0 0.0
      %289 = vmatprep.subr.mxu0 0.0
      %290 = vmatpush1.msra.mxu0 0.0
      %291 = vmatprep.subr.mxu0 0.0
      %292 = vmatpush1.msra.mxu0 0.0
      %293 = vmatprep.subr.mxu0 0.0
      %294 = vmatpush1.msra.mxu0 0.0
      %295 = vmatprep.subr.mxu0 0.0
      %296 = vmatpush1.msra.mxu0 0.0
      %297 = vmatprep.subr.mxu0 0.0
      %298 = vmatpush1.msra.mxu0 0.0
      %299 = vmatprep.subr.mxu0 0.0
      %300 = vmatpush1.msra.mxu0 0.0
      %301 = vmatprep.subr.mxu0 0.0
      %302 = vmatpush1.msra.mxu0 0.0
      %303 = vmatprep.subr.mxu0 0.0
      %304 = vmatpush1.msra.mxu0 0.0
      %305 = vmatprep.subr.mxu0 0.0
      %306 = vmatpush1.msra.mxu0 0.0
      %307 = vmatprep.subr.mxu0 0.0
      %308 = vmatpush1.msra.mxu0 0.0
      %309 = vmatprep.subr.mxu0 0.0
      %310 = vmatpush1.msra.mxu0 %v277
      %311 = vmatprep.subr.mxu0 0.0
      %312 = vmatpush2.msra.mxu0 0.0
      %313 = vmatprep.subr.mxu0 0.0
      %314 = vmatpush2.msra.mxu0 0.0
      %315 = vmatprep.subr.mxu0 0.0
      %316 = vmatpush2.msra.mxu0 0.0
      %317 = vmatprep.subr.mxu0 0.0
      %318 = vmatpush2.msra.mxu0 0.0
      %319 = vmatprep.subr.mxu0 0.0
      %320 = vmatpush2.msra.mxu0 0.0
      %321 = vmatprep.subr.mxu0 0.0
      %322 = vmatpush2.msra.mxu0 0.0
      %323 = vmatprep.subr.mxu0 0.0
      %324 = vmatpush2.msra.mxu0 0.0
      %325 = vmatprep.subr.mxu0 0.0
      %326 = vmatpush2.msra.mxu0 0.0
      %327 = vmatprep.subr.mxu0 0.0
      %328 = vmatpush2.msra.mxu0 0.0
      %329 = vmatprep.subr.mxu0 0.0
      %330 = vmatpush2.msra.mxu0 0.0
      %331 = vmatprep.subr.mxu0 0.0
      %332 = vmatpush2.msra.mxu0 0.0
      %333 = vmatprep.subr.mxu0 0.0
      %334 = vmatpush2.msra.mxu0 0.0
      %335 = vmatprep.subr.mxu0 0.0
      %336 = vmatpush2.msra.mxu0 0.0
      %337 = vmatprep.subr.mxu0 0.0
      %338 = vmatpush2.msra.mxu0 0.0
      %339 = vmatprep.subr.mxu0 0.0
      %340 = vmatpush2.msra.mxu0 0.0
      %341 = vmatprep.subr.mxu0 0.0
      %342 = vmatpush2.msra.mxu0 0.0
      %343 = vmatprep.mubr.f32.mxu0 0.0
      %344 = vmatmul.mubr.f32.gmra.mxu0 %v264
      %v345 = vpop.f32.mrf.mxu0
      %v346 = vadd.f32 0.0, %v345
      %v347 = vpop.f32.mrf.mxu0
      %348 = vmatprep.mubr.f32.mxu0 0.0
      %349 = vmatmul.mubr.f32.gmra.mxu0 %v267
      %v350 = vpop.f32.mrf.mxu0
      %v351 = vadd.f32 0.0, %v350
      %v352 = vpop.f32.mrf.mxu0
      %353 = vmatprep.mubr.f32.mxu0 0.0
      %354 = vmatmul.mubr.f32.gmra.mxu0 %v270
      %v355 = vpop.f32.mrf.mxu0
      %v356 = vadd.f32 0.0, %v355
      %v357 = vpop.f32.mrf.mxu0
      %358 = vmatprep.mubr.f32.mxu0 0.0
      %359 = vmatmul.mubr.f32.gmra.mxu0 %v273
      %v360 = vpop.f32.mrf.mxu0
      %v361 = vadd.f32 0.0, %v360
      %v362 = vpop.f32.mrf.mxu0
      %363 = vdwg.mxu0
      %v364 = vld [vmem:[%s2] sm:$0x1]
      %v366 = vlaneseq
      %v367 = vshrl.u32 %v366, 7
      %v368 = vsub.s32 0, %v367
      %v369 = vrot.slane %v364, %v368
      %v371 = vmul.f32 %v346, %v369
      %v372 = vmul.f32 %v351, %v369
      %v373 = vmul.f32 %v356, %v369
      %v374 = vmul.f32 %v361, %v369
      %v375 = vld [vmem:[%s3] sm:$0x1]
      %v377 = vlaneseq
      %v378 = vshrl.u32 %v377, 7
      %v379 = vsub.s32 0, %v378
      %v380 = vrot.slane %v375, %v379
      %v382 = vadd.f32 %v371, %v380
      %v383 = vadd.f32 %v372, %v380
      %v384 = vadd.f32 %v373, %v380
      %v385 = vadd.f32 %v374, %v380
      %v386 = vmax.f32 %v382, 0.0
      %v387 = vmax.f32 %v383, 0.0
      %v388 = vmax.f32 %v384, 0.0
      %v389 = vmax.f32 %v385, 0.0
      %vm394 = vcmask 1046528
      %v395 = vrot.slane %v386, 1
      %v396 = vrot.slane %v387, 1
      %v397 = vsel %vm394, %v395, %v396
      %v398 = vrot.slane %v388, 1
      %v399 = vsel %vm394, %v396, %v398
      %v400 = vrot.slane %v389, 1
      %v401 = vsel %vm394, %v398, %v400
      %v406 = vmax.f32 %v386, %v397
      %v407 = vmax.f32 %v387, %v399
      %v408 = vmax.f32 %v388, %v401
      %v409 = vmax.f32 %v389, %v400
      %410 = vst [vmem:[%s197] sm:$0xff] %v406
      %411 = vst [vmem:[%s197 + $0x8] sm:$0xff] %v407
      %412 = vst [vmem:[%s197 + $0x10] sm:$0xff] %v408
      %413 = vst [vmem:[%s197 + $0x18] sm:$0x7f] %v409
      %p414 = scmp.lt.s32.totalorder %s15, 1
      %s415 = scalar_select %p414, %s15, 1
      %s416 = smul.addr %s415, 4
      %s417 = smul.addr %s416, 8
      %s418 = scalar_lea.vmem %s4, %s417
      // Predicated region
      $region37: #{tpu_custom_call.1} parent=35 // pred_check
        %p419 = pneg %p122
      $region38: #{tpu_custom_call.1} parent=35 // pred_check_branch
        %421 = sbr.rel (%p419) target = $region40
      $region39: #{tpu_custom_call.1} parent=35 // pred_region
        _
      $region40: #{tpu_custom_call.1} parent=35 // pred_fallthru
        _
    $region36: #{tpu_custom_call.1} parent=5 // pred_fallthru
      _
    %p422 = scmp.le.s32.totalorder 2, %s10
    // Predicated region
    $region41: #{tpu_custom_call.1} parent=5 // pred_check
      %p423 = pneg %p422
    $region42: #{tpu_custom_call.1} parent=5 // pred_check_branch
      %425 = sbr.rel (%p423) target = $region44
    $region43: #{tpu_custom_call.1} parent=5 // pred_region
      %s426 = ssub.s32 %s10, 2
      // Predicated region
      $region45: #{tpu_custom_call.1} parent=43 // pred_check
        %p427 = pneg %p128
      $region46: #{tpu_custom_call.1} parent=43 // pred_check_branch
        %429 = sbr.rel (%p427) target = $region48
      $region47: #{tpu_custom_call.1} parent=43 // pred_region
        %p430 = scmp.lt.s32.totalorder %s16, 1
        %s431 = scalar_select %p430, %s16, 1
        %s432 = smul.addr %s431, 4
        %s433 = smul.addr %s432, 8
        %s434 = scalar_lea.vmem %s4, %s433
      $region48: #{tpu_custom_call.1} parent=43 // pred_fallthru
        _
    $region44: #{tpu_custom_call.1} parent=5 // pred_fallthru
      _
  $region6: #{tpu_custom_call.1} parent=0 // loop_footer
    %s14 = sadd.s32 1, %s10
  $region7: #{tpu_custom_call.1} parent=0 // loop_footer_branch
    %9 = sbr.rel target = $region3
  $region8: #{tpu_custom_call.1} parent=0 // loop_exit
    _

</llo_original>
